<compile_context>
chip_gen: v7x
topology: tpu7x:2x2x1
jax: 0.10.0
libtpu: 0.0.40
codegen_flags: <defaults>
</compile_context>

<pallas_src>
import math
import random

import jax
import jax.numpy as jnp
import numpy as np
from jax.experimental import pallas as pl
from jax.experimental.pallas import tpu as pltpu


NEG_SLOPE = 0.01   # F.leaky_relu default negative slope
OUT_PAD = 128      # lane-dense width for the 1-wide final layer


def _lrelu(x):
    return jnp.where(x > 0, x, NEG_SLOPE * x)


def _mlp_kernel(x_ref,
                w1_ref, w2_ref, w3_ref, w4_ref, w5_ref, w6_ref,
                b1_ref, b2_ref, b3_ref, b4_ref, b5_ref, b6_ref,
                o_ref):
    """One row-tile of the MLP: 6 Linear layers (bf16 matmul, f32 accumulate),
    leaky_relu after each layer (matching the PyTorch module, incl. after fc_6),
    sigmoid at the end.  Final layer is padded to OUT_PAD lanes; padded columns
    are discarded by the wrapper."""

    def layer(h_bf16, w_ref, b_ref):
        acc = jnp.dot(h_bf16, w_ref[...], preferred_element_type=jnp.float32)
        return _lrelu(acc + b_ref[...])          # bias (1, out) broadcasts over rows

    h = layer(x_ref[...], w1_ref, b1_ref)        # x already bf16
    h = layer(h.astype(jnp.bfloat16), w2_ref, b2_ref)
    h = layer(h.astype(jnp.bfloat16), w3_ref, b3_ref)
    h = layer(h.astype(jnp.bfloat16), w4_ref, b4_ref)
    h = layer(h.astype(jnp.bfloat16), w5_ref, b5_ref)
    h = layer(h.astype(jnp.bfloat16), w6_ref, b6_ref)
    o_ref[...] = jax.nn.sigmoid(h)               # (TILE_M, OUT_PAD) f32


def _pack_params(params):
    """Pre-cast weights to bf16 and pad the final (in, 1) layer to OUT_PAD lanes."""
    ws = [w for (w, _) in params]
    bs = [b for (_, b) in params]

    w6, b6 = ws[-1], bs[-1]
    ws[-1] = jnp.pad(w6, ((0, 0), (0, OUT_PAD - w6.shape[1])))
    bs[-1] = jnp.pad(b6, ((0, 0), (0, OUT_PAD - b6.shape[1])))

    ws_bf16 = [w.astype(jnp.bfloat16) for w in ws]
    bs_f32 = [b.astype(jnp.float32) for b in bs]
    return ws_bf16, bs_f32


def _run_mlp(x, ws_bf16, bs_f32, tile_m=512):
    """x: (N, C) f32 sampled-pixel rows. Returns (N,) f32 sigmoid outputs."""
    n, c = x.shape
    tile_m = min(tile_m, max(8, ((n + 7) // 8) * 8))
    n_pad = pl.cdiv(n, tile_m) * tile_m
    if n_pad != n:
        x = jnp.pad(x, ((0, n_pad - n), (0, 0)))
    x = x.astype(jnp.bfloat16)                   # halve the row-stream DMA

    in_specs = [pl.BlockSpec((tile_m, c), lambda i: (i, 0))]
    in_specs += [pl.BlockSpec(w.shape, lambda i: (0, 0)) for w in ws_bf16]
    in_specs += [pl.BlockSpec(b.shape, lambda i: (0, 0)) for b in bs_f32]
    out_specs = pl.BlockSpec((tile_m, OUT_PAD), lambda i: (i, 0))

    out = pl.pallas_call(
        _mlp_kernel,
        out_shape=jax.ShapeDtypeStruct((n_pad, OUT_PAD), jnp.float32),
        grid=(n_pad // tile_m,),
        in_specs=in_specs,
        out_specs=out_specs,
        compiler_params=pltpu.CompilerParams(
            dimension_semantics=("parallel",),
            vmem_limit_bytes=32 * 1024 * 1024),
    )(x, *ws_bf16, *bs_f32)
    return out[:n, 0]


def init_params(key, input_nc, d):
    """Synthetic nn.Linear-style weights. Linear_i: (in, out) W and (1, out) b."""
    dims = [(input_nc, d), (d, 2 * d), (2 * d, 4 * d),
            (4 * d, 8 * d), (8 * d, 4 * d), (4 * d, 1)]
    params = []
    for (fan_in, fan_out) in dims:
        key, kw, kb = jax.random.split(key, 3)
        bound = 1.0 / math.sqrt(fan_in)
        w = jax.random.uniform(kw, (fan_in, fan_out), jnp.float32, -bound, bound)
        b = jax.random.uniform(kb, (1, fan_out), jnp.float32, -bound, bound)
        params.append((w, b))
    return params


def spe_discriminator_forward(input_real, result, params, inter,
                              location_h, location_w, tile_m=512):
    """Mirrors spe_discriminator.forward.

    input_real, result: (B, C, H, W) float32 (NCHW, like PyTorch).
    Returns (real, pre), each of shape (B, numbers, numbers).
    """
    B, C, H, _ = input_real.shape
    numbers = int(math.ceil(H / inter))

    locs_h = location_h + inter * jnp.arange(numbers)
    locs_w = location_w + inter * jnp.arange(numbers)

    ws_bf16, bs_f32 = _pack_params(params)

    def gather_rows(x):
        # (B, C, numbers, numbers) -> (h, w, B, C) row order, matching the loop.
        sub = x[:, :, locs_h][:, :, :, locs_w]
        sub = jnp.transpose(sub, (2, 3, 0, 1))
        return sub.reshape(numbers * numbers * B, C)

    rows_real = gather_rows(input_real)
    rows_pre = gather_rows(result)
    n = rows_real.shape[0]

    # Single kernel launch for both streams (weights DMA'd once).
    out_all = _run_mlp(jnp.concatenate([rows_real, rows_pre], axis=0),
                       ws_bf16, bs_f32, tile_m=tile_m)

    def unflatten(flat):
        out = flat.reshape(numbers, numbers, B)
        return jnp.transpose(out, (2, 0, 1))     # torch: permute(2, 0, 1)

    return unflatten(out_all[:n]), unflatten(out_all[n:])


def _reference_forward(input_real, result, params, inter, location_h, location_w):
    """Pure-JAX f32 reference of the PyTorch module, for a correctness check."""
    B, C, H, _ = input_real.shape
    numbers = int(math.ceil(H / inter))
    locs_h = location_h + inter * jnp.arange(numbers)
    locs_w = location_w + inter * jnp.arange(numbers)

    def run(x):
        sub = x[:, :, locs_h][:, :, :, locs_w]
        rows = jnp.transpose(sub, (2, 3, 0, 1)).reshape(-1, C)
        h = rows
        for (w, b) in params:
            h = _lrelu(h @ w + b)
        out = jax.nn.sigmoid(h)[:, 0].reshape(numbers, numbers, B)
        return jnp.transpose(out, (2, 0, 1))

    return run(input_real), run(result)


if __name__ == "__main__":
    # Small, deterministic example shapes consistent with the module.
    B, input_nc, inter, d = 2, 12, 8, 32
    H = W = 16  # numbers = ceil(16 / 8) = 2

    key = jax.random.PRNGKey(0)
    k_real, k_pre, k_params = jax.random.split(key, 3)

    input_real = jax.random.normal(k_real, (B, input_nc, H, W), jnp.float32)
    result = jax.random.normal(k_pre, (B, input_nc, H, W), jnp.float32)
    params = init_params(k_params, input_nc, d)

    # TODO(synk): random.randrange(inter) is host-side Python RNG, done outside the kernel.
    rng = random.Random(0)
    location_h = rng.randrange(inter)
    location_w = rng.randrange(inter)

    fwd = jax.jit(spe_discriminator_forward, static_argnums=(3,))
    real_out, pre_out = fwd(input_real, result, params, inter,
                            location_h, location_w)
    jax.block_until_ready((real_out, pre_out))

    numbers = int(math.ceil(H / inter))
    assert real_out.shape == (B, numbers, numbers)
    assert pre_out.shape == (B, numbers, numbers)

    real_ref, pre_ref = _reference_forward(
        input_real, result, params, inter, location_h, location_w)
    assert np.allclose(np.asarray(real_out), np.asarray(real_ref), atol=5e-2)
    assert np.allclose(np.asarray(pre_out), np.asarray(pre_ref), atol=5e-2)

    print("KERNEL_OK")
</pallas_src>

<mosaic_0001>
module attributes {stable_mosaic.version = 11 : i64} {
  func.func @_mlp_kernel(%arg0: i32, %arg1: memref<16x12xbf16, #tpu.memory_space<vmem>>, %arg2: memref<12x32xbf16, #tpu.memory_space<vmem>>, %arg3: memref<32x64xbf16, #tpu.memory_space<vmem>>, %arg4: memref<64x128xbf16, #tpu.memory_space<vmem>>, %arg5: memref<128x256xbf16, #tpu.memory_space<vmem>>, %arg6: memref<256x128xbf16, #tpu.memory_space<vmem>>, %arg7: memref<128x128xbf16, #tpu.memory_space<vmem>>, %arg8: memref<1x32xf32, #tpu.memory_space<vmem>>, %arg9: memref<1x64xf32, #tpu.memory_space<vmem>>, %arg10: memref<1x128xf32, #tpu.memory_space<vmem>>, %arg11: memref<1x256xf32, #tpu.memory_space<vmem>>, %arg12: memref<1x128xf32, #tpu.memory_space<vmem>>, %arg13: memref<1x128xf32, #tpu.memory_space<vmem>>, %arg14: memref<16x128xf32, #tpu.memory_space<vmem>>) attributes {dimension_semantics = [#tpu.dimension_semantics<parallel>], iteration_bounds = array<i64: 1>, scalar_prefetch = 0 : i64, scratch_operands = 0 : i64, tpu.core_type = #tpu.core_type<tc>, window_params = [{transform_indices = @transform_0, window_bounds = array<i64: 16, 12>}, {pipeline_mode = #tpu.pipeline_mode<synchronous>, transform_indices = @transform_1, window_bounds = array<i64: 12, 32>}, {pipeline_mode = #tpu.pipeline_mode<synchronous>, transform_indices = @transform_2, window_bounds = array<i64: 32, 64>}, {pipeline_mode = #tpu.pipeline_mode<synchronous>, transform_indices = @transform_3, window_bounds = array<i64: 64, 128>}, {pipeline_mode = #tpu.pipeline_mode<synchronous>, transform_indices = @transform_4, window_bounds = array<i64: 128, 256>}, {pipeline_mode = #tpu.pipeline_mode<synchronous>, transform_indices = @transform_5, window_bounds = array<i64: 256, 128>}, {pipeline_mode = #tpu.pipeline_mode<synchronous>, transform_indices = @transform_6, window_bounds = array<i64: 128, 128>}, {pipeline_mode = #tpu.pipeline_mode<synchronous>, transform_indices = @transform_7, window_bounds = array<i64: 1, 32>}, {pipeline_mode = #tpu.pipeline_mode<synchronous>, transform_indices = @transform_8, window_bounds = array<i64: 1, 64>}, {pipeline_mode = #tpu.pipeline_mode<synchronous>, transform_indices = @transform_9, window_bounds = array<i64: 1, 128>}, {pipeline_mode = #tpu.pipeline_mode<synchronous>, transform_indices = @transform_10, window_bounds = array<i64: 1, 256>}, {pipeline_mode = #tpu.pipeline_mode<synchronous>, transform_indices = @transform_11, window_bounds = array<i64: 1, 128>}, {pipeline_mode = #tpu.pipeline_mode<synchronous>, transform_indices = @transform_12, window_bounds = array<i64: 1, 128>}, {transform_indices = @transform_13, window_bounds = array<i64: 16, 128>}]} {
    %c0 = arith.constant 0 : index
    %c0_0 = arith.constant 0 : index
    %0 = vector.load %arg1[%c0, %c0_0] : memref<16x12xbf16, #tpu.memory_space<vmem>>, vector<16x12xbf16>
    %c0_1 = arith.constant 0 : index
    %c0_2 = arith.constant 0 : index
    %1 = vector.load %arg2[%c0_1, %c0_2] : memref<12x32xbf16, #tpu.memory_space<vmem>>, vector<12x32xbf16>
    %cst = arith.constant dense<0.000000e+00> : vector<16x32xf32>
    %2 = tpu.matmul %0, %1, %cst {dimension_numbers = #tpu.dot_dimension_numbers<[1], [0], [0], [1], [0, 0, 1, 1], [], []>} : vector<16x12xbf16>, vector<12x32xbf16>, vector<16x32xf32> -> vector<16x32xf32>
    %c0_3 = arith.constant 0 : index
    %c0_4 = arith.constant 0 : index
    %3 = vector.load %arg8[%c0_3, %c0_4] : memref<1x32xf32, #tpu.memory_space<vmem>>, vector<1x32xf32>
    %4 = vector.broadcast %3 : vector<1x32xf32> to vector<16x32xf32>
    %5 = arith.addf %2, %4 : vector<16x32xf32>
    %cst_5 = arith.constant 0.000000e+00 : f32
    %6 = vector.broadcast %cst_5 : f32 to vector<16x32xf32>
    %7 = arith.cmpf ogt, %5, %6 : vector<16x32xf32>
    %cst_6 = arith.constant 0.00999999977 : f32
    %8 = vector.broadcast %cst_6 : f32 to vector<16x32xf32>
    %9 = arith.mulf %8, %5 : vector<16x32xf32>
    %10 = arith.select %7, %5, %9 : vector<16x32xi1>, vector<16x32xf32>
    %11 = arith.truncf %10 : vector<16x32xf32> to vector<16x32xbf16>
    %c0_7 = arith.constant 0 : index
    %c0_8 = arith.constant 0 : index
    %12 = vector.load %arg3[%c0_7, %c0_8] : memref<32x64xbf16, #tpu.memory_space<vmem>>, vector<32x64xbf16>
    %cst_9 = arith.constant dense<0.000000e+00> : vector<16x64xf32>
    %13 = tpu.matmul %11, %12, %cst_9 {dimension_numbers = #tpu.dot_dimension_numbers<[1], [0], [0], [1], [0, 0, 1, 1], [], []>} : vector<16x32xbf16>, vector<32x64xbf16>, vector<16x64xf32> -> vector<16x64xf32>
    %c0_10 = arith.constant 0 : index
    %c0_11 = arith.constant 0 : index
    %14 = vector.load %arg9[%c0_10, %c0_11] : memref<1x64xf32, #tpu.memory_space<vmem>>, vector<1x64xf32>
    %15 = vector.broadcast %14 : vector<1x64xf32> to vector<16x64xf32>
    %16 = arith.addf %13, %15 : vector<16x64xf32>
    %cst_12 = arith.constant 0.000000e+00 : f32
    %17 = vector.broadcast %cst_12 : f32 to vector<16x64xf32>
    %18 = arith.cmpf ogt, %16, %17 : vector<16x64xf32>
    %cst_13 = arith.constant 0.00999999977 : f32
    %19 = vector.broadcast %cst_13 : f32 to vector<16x64xf32>
    %20 = arith.mulf %19, %16 : vector<16x64xf32>
    %21 = arith.select %18, %16, %20 : vector<16x64xi1>, vector<16x64xf32>
    %22 = arith.truncf %21 : vector<16x64xf32> to vector<16x64xbf16>
    %c0_14 = arith.constant 0 : index
    %c0_15 = arith.constant 0 : index
    %23 = vector.load %arg4[%c0_14, %c0_15] : memref<64x128xbf16, #tpu.memory_space<vmem>>, vector<64x128xbf16>
    %cst_16 = arith.constant dense<0.000000e+00> : vector<16x128xf32>
    %24 = tpu.matmul %22, %23, %cst_16 {dimension_numbers = #tpu.dot_dimension_numbers<[1], [0], [0], [1], [0, 0, 1, 1], [], []>} : vector<16x64xbf16>, vector<64x128xbf16>, vector<16x128xf32> -> vector<16x128xf32>
    %c0_17 = arith.constant 0 : index
    %c0_18 = arith.constant 0 : index
    %25 = vector.load %arg10[%c0_17, %c0_18] : memref<1x128xf32, #tpu.memory_space<vmem>>, vector<1x128xf32>
    %26 = vector.broadcast %25 : vector<1x128xf32> to vector<16x128xf32>
    %27 = arith.addf %24, %26 : vector<16x128xf32>
    %cst_19 = arith.constant 0.000000e+00 : f32
    %28 = vector.broadcast %cst_19 : f32 to vector<16x128xf32>
    %29 = arith.cmpf ogt, %27, %28 : vector<16x128xf32>
    %cst_20 = arith.constant 0.00999999977 : f32
    %30 = vector.broadcast %cst_20 : f32 to vector<16x128xf32>
    %31 = arith.mulf %30, %27 : vector<16x128xf32>
    %32 = arith.select %29, %27, %31 : vector<16x128xi1>, vector<16x128xf32>
    %33 = arith.truncf %32 : vector<16x128xf32> to vector<16x128xbf16>
    %c0_21 = arith.constant 0 : index
    %c0_22 = arith.constant 0 : index
    %34 = vector.load %arg5[%c0_21, %c0_22] : memref<128x256xbf16, #tpu.memory_space<vmem>>, vector<128x256xbf16>
    %cst_23 = arith.constant dense<0.000000e+00> : vector<16x256xf32>
    %35 = tpu.matmul %33, %34, %cst_23 {dimension_numbers = #tpu.dot_dimension_numbers<[1], [0], [0], [1], [0, 0, 1, 1], [], []>} : vector<16x128xbf16>, vector<128x256xbf16>, vector<16x256xf32> -> vector<16x256xf32>
    %c0_24 = arith.constant 0 : index
    %c0_25 = arith.constant 0 : index
    %36 = vector.load %arg11[%c0_24, %c0_25] : memref<1x256xf32, #tpu.memory_space<vmem>>, vector<1x256xf32>
    %37 = vector.broadcast %36 : vector<1x256xf32> to vector<16x256xf32>
    %38 = arith.addf %35, %37 : vector<16x256xf32>
    %cst_26 = arith.constant 0.000000e+00 : f32
    %39 = vector.broadcast %cst_26 : f32 to vector<16x256xf32>
    %40 = arith.cmpf ogt, %38, %39 : vector<16x256xf32>
    %cst_27 = arith.constant 0.00999999977 : f32
    %41 = vector.broadcast %cst_27 : f32 to vector<16x256xf32>
    %42 = arith.mulf %41, %38 : vector<16x256xf32>
    %43 = arith.select %40, %38, %42 : vector<16x256xi1>, vector<16x256xf32>
    %44 = arith.truncf %43 : vector<16x256xf32> to vector<16x256xbf16>
    %c0_28 = arith.constant 0 : index
    %c0_29 = arith.constant 0 : index
    %45 = vector.load %arg6[%c0_28, %c0_29] : memref<256x128xbf16, #tpu.memory_space<vmem>>, vector<256x128xbf16>
    %cst_30 = arith.constant dense<0.000000e+00> : vector<16x128xf32>
    %46 = tpu.matmul %44, %45, %cst_30 {dimension_numbers = #tpu.dot_dimension_numbers<[1], [0], [0], [1], [0, 0, 1, 1], [], []>} : vector<16x256xbf16>, vector<256x128xbf16>, vector<16x128xf32> -> vector<16x128xf32>
    %c0_31 = arith.constant 0 : index
    %c0_32 = arith.constant 0 : index
    %47 = vector.load %arg12[%c0_31, %c0_32] : memref<1x128xf32, #tpu.memory_space<vmem>>, vector<1x128xf32>
    %48 = vector.broadcast %47 : vector<1x128xf32> to vector<16x128xf32>
    %49 = arith.addf %46, %48 : vector<16x128xf32>
    %cst_33 = arith.constant 0.000000e+00 : f32
    %50 = vector.broadcast %cst_33 : f32 to vector<16x128xf32>
    %51 = arith.cmpf ogt, %49, %50 : vector<16x128xf32>
    %cst_34 = arith.constant 0.00999999977 : f32
    %52 = vector.broadcast %cst_34 : f32 to vector<16x128xf32>
    %53 = arith.mulf %52, %49 : vector<16x128xf32>
    %54 = arith.select %51, %49, %53 : vector<16x128xi1>, vector<16x128xf32>
    %55 = arith.truncf %54 : vector<16x128xf32> to vector<16x128xbf16>
    %c0_35 = arith.constant 0 : index
    %c0_36 = arith.constant 0 : index
    %56 = vector.load %arg7[%c0_35, %c0_36] : memref<128x128xbf16, #tpu.memory_space<vmem>>, vector<128x128xbf16>
    %cst_37 = arith.constant dense<0.000000e+00> : vector<16x128xf32>
    %57 = tpu.matmul %55, %56, %cst_37 {dimension_numbers = #tpu.dot_dimension_numbers<[1], [0], [0], [1], [0, 0, 1, 1], [], []>} : vector<16x128xbf16>, vector<128x128xbf16>, vector<16x128xf32> -> vector<16x128xf32>
    %c0_38 = arith.constant 0 : index
    %c0_39 = arith.constant 0 : index
    %58 = vector.load %arg13[%c0_38, %c0_39] : memref<1x128xf32, #tpu.memory_space<vmem>>, vector<1x128xf32>
    %59 = vector.broadcast %58 : vector<1x128xf32> to vector<16x128xf32>
    %60 = arith.addf %57, %59 : vector<16x128xf32>
    %cst_40 = arith.constant 0.000000e+00 : f32
    %61 = vector.broadcast %cst_40 : f32 to vector<16x128xf32>
    %62 = arith.cmpf ogt, %60, %61 : vector<16x128xf32>
    %cst_41 = arith.constant 0.00999999977 : f32
    %63 = vector.broadcast %cst_41 : f32 to vector<16x128xf32>
    %64 = arith.mulf %63, %60 : vector<16x128xf32>
    %65 = arith.select %62, %60, %64 : vector<16x128xi1>, vector<16x128xf32>
    %66 = arith.negf %65 : vector<16x128xf32>
    %67 = math.exp %66 : vector<16x128xf32>
    %cst_42 = arith.constant 1.000000e+00 : f32
    %68 = vector.broadcast %cst_42 : f32 to vector<16x128xf32>
    %69 = arith.addf %68, %67 : vector<16x128xf32>
    %70 = arith.divf %68, %69 : vector<16x128xf32>
    %c0_43 = arith.constant 0 : index
    %c0_44 = arith.constant 0 : index
    %71 = vector.load %arg14[%c0_43, %c0_44] : memref<16x128xf32, #tpu.memory_space<vmem>>, vector<16x128xf32>
    tpu.vector_store %arg14[%c0_43, %c0_44], %70 {strides = array<i32>} : memref<16x128xf32, #tpu.memory_space<vmem>>, vector<16x128xf32>,
    return
  }
  func.func @transform_0(%arg0: i32) -> (i32, i32) {
    %c0_i32 = arith.constant 0 : i32
    %c0_i32_0 = arith.constant 0 : i32
    return %arg0, %c0_i32 : i32, i32
  }
  func.func @transform_1(%arg0: i32) -> (i32, i32) {
    %c0_i32 = arith.constant 0 : i32
    %c0_i32_0 = arith.constant 0 : i32
    %c0_i32_1 = arith.constant 0 : i32
    return %c0_i32, %c0_i32_0 : i32, i32
  }
  func.func @transform_2(%arg0: i32) -> (i32, i32) {
    %c0_i32 = arith.constant 0 : i32
    %c0_i32_0 = arith.constant 0 : i32
    %c0_i32_1 = arith.constant 0 : i32
    return %c0_i32, %c0_i32_0 : i32, i32
  }
  func.func @transform_3(%arg0: i32) -> (i32, i32) {
    %c0_i32 = arith.constant 0 : i32
    %c0_i32_0 = arith.constant 0 : i32
    %c0_i32_1 = arith.constant 0 : i32
    return %c0_i32, %c0_i32_0 : i32, i32
  }
  func.func @transform_4(%arg0: i32) -> (i32, i32) {
    %c0_i32 = arith.constant 0 : i32
    %c0_i32_0 = arith.constant 0 : i32
    %c0_i32_1 = arith.constant 0 : i32
    return %c0_i32, %c0_i32_0 : i32, i32
  }
  func.func @transform_5(%arg0: i32) -> (i32, i32) {
    %c0_i32 = arith.constant 0 : i32
    %c0_i32_0 = arith.constant 0 : i32
    %c0_i32_1 = arith.constant 0 : i32
    return %c0_i32, %c0_i32_0 : i32, i32
  }
  func.func @transform_6(%arg0: i32) -> (i32, i32) {
    %c0_i32 = arith.constant 0 : i32
    %c0_i32_0 = arith.constant 0 : i32
    %c0_i32_1 = arith.constant 0 : i32
    return %c0_i32, %c0_i32_0 : i32, i32
  }
  func.func @transform_7(%arg0: i32) -> (i32, i32) {
    %c0_i32 = arith.constant 0 : i32
    %c0_i32_0 = arith.constant 0 : i32
    %c0_i32_1 = arith.constant 0 : i32
    return %c0_i32, %c0_i32_0 : i32, i32
  }
  func.func @transform_8(%arg0: i32) -> (i32, i32) {
    %c0_i32 = arith.constant 0 : i32
    %c0_i32_0 = arith.constant 0 : i32
    %c0_i32_1 = arith.constant 0 : i32
    return %c0_i32, %c0_i32_0 : i32, i32
  }
  func.func @transform_9(%arg0: i32) -> (i32, i32) {
    %c0_i32 = arith.constant 0 : i32
    %c0_i32_0 = arith.constant 0 : i32
    %c0_i32_1 = arith.constant 0 : i32
    return %c0_i32, %c0_i32_0 : i32, i32
  }
  func.func @transform_10(%arg0: i32) -> (i32, i32) {
    %c0_i32 = arith.constant 0 : i32
    %c0_i32_0 = arith.constant 0 : i32
    %c0_i32_1 = arith.constant 0 : i32
    return %c0_i32, %c0_i32_0 : i32, i32
  }
  func.func @transform_11(%arg0: i32) -> (i32, i32) {
    %c0_i32 = arith.constant 0 : i32
    %c0_i32_0 = arith.constant 0 : i32
    %c0_i32_1 = arith.constant 0 : i32
    return %c0_i32, %c0_i32_0 : i32, i32
  }
  func.func @transform_12(%arg0: i32) -> (i32, i32) {
    %c0_i32 = arith.constant 0 : i32
    %c0_i32_0 = arith.constant 0 : i32
    %c0_i32_1 = arith.constant 0 : i32
    return %c0_i32, %c0_i32_0 : i32, i32
  }
  func.func @transform_13(%arg0: i32) -> (i32, i32) {
    %c0_i32 = arith.constant 0 : i32
    %c0_i32_0 = arith.constant 0 : i32
    return %arg0, %c0_i32 : i32, i32
  }
}

</mosaic_0001>

<llo_original>
// kernel: spe_discriminator_forward.1
$region0: #{spe_discriminator_forward.1}
  #allocation0 [shape = 'u32[]', space=smem, size = 0x4, offset = 0x4, fixed_abs, tag = 'smem constant byte address 0x4 - core index']
  #allocation1 [shape = 'u32[144,128]{1,0:T(1,128)}', space=vmem, size = 0x12000, scoped, tag = 'internal scratch']
  %s0 = inlined_call_operand.vmem [shape: bf16[16,12], index: 0, kind: input, shape index: {}]
  %s1 = inlined_call_operand.vmem [shape: bf16[12,32], index: 1, kind: input, shape index: {}]
  %s2 = inlined_call_operand.vmem [shape: bf16[32,64], index: 2, kind: input, shape index: {}]
  %s3 = inlined_call_operand.vmem [shape: bf16[64,128], index: 3, kind: input, shape index: {}]
  %s4 = inlined_call_operand.vmem [shape: bf16[128,256], index: 4, kind: input, shape index: {}]
  %s5 = inlined_call_operand.vmem [shape: bf16[256,128], index: 5, kind: input, shape index: {}]
  %s6 = inlined_call_operand.vmem [shape: bf16[128,128], index: 6, kind: input, shape index: {}]
  %s7 = inlined_call_operand.vmem [shape: f32[1,32], index: 7, kind: input, shape index: {}]
  %s8 = inlined_call_operand.vmem [shape: f32[1,64], index: 8, kind: input, shape index: {}]
  %s9 = inlined_call_operand.vmem [shape: f32[1,128], index: 9, kind: input, shape index: {}]
  %s10 = inlined_call_operand.vmem [shape: f32[1,256], index: 10, kind: input, shape index: {}]
  %s11 = inlined_call_operand.vmem [shape: f32[1,128], index: 11, kind: input, shape index: {}]
  %s12 = inlined_call_operand.vmem [shape: f32[1,128], index: 12, kind: input, shape index: {}]
  %s13 = inlined_call_operand.vmem [shape: f32[16,128], index: 13, kind: output, shape index: {}]
  %s14 = sld [smem:[#allocation0]]
  $region62: #{spe_discriminator_forward.1} parent=0
    _
  %s16 = ssub.s32 1, %s14
  %s17 = scalar_select 0, %s16, %s14
  // Predicated region
  $region2: #{spe_discriminator_forward.1} parent=0 // pred_check
    _
  $region3: #{spe_discriminator_forward.1} parent=0 // pred_check_branch
    %19 = sbr.rel (0) target = $region5
  $region4: #{spe_discriminator_forward.1} parent=0 // pred_region
    _
  $region5: #{spe_discriminator_forward.1} parent=0 // pred_fallthru
    _
  // Predicated region
  $region6: #{spe_discriminator_forward.1} parent=0 // pred_check
    _
  $region7: #{spe_discriminator_forward.1} parent=0 // pred_check_branch
    %21 = sbr.rel (0) target = $region9
  $region8: #{spe_discriminator_forward.1} parent=0 // pred_region
    _
  $region9: #{spe_discriminator_forward.1} parent=0 // pred_fallthru
    _
  // Predicated region
  $region10: #{spe_discriminator_forward.1} parent=0 // pred_check
    _
  $region11: #{spe_discriminator_forward.1} parent=0 // pred_check_branch
    %23 = sbr.rel (0) target = $region13
  $region12: #{spe_discriminator_forward.1} parent=0 // pred_region
    _
  $region13: #{spe_discriminator_forward.1} parent=0 // pred_fallthru
    _
  // Predicated region
  $region14: #{spe_discriminator_forward.1} parent=0 // pred_check
    _
  $region15: #{spe_discriminator_forward.1} parent=0 // pred_check_branch
    %25 = sbr.rel (0) target = $region17
  $region16: #{spe_discriminator_forward.1} parent=0 // pred_region
    _
  $region17: #{spe_discriminator_forward.1} parent=0 // pred_fallthru
    _
  // Predicated region
  $region18: #{spe_discriminator_forward.1} parent=0 // pred_check
    _
  $region19: #{spe_discriminator_forward.1} parent=0 // pred_check_branch
    %27 = sbr.rel (0) target = $region21
  $region20: #{spe_discriminator_forward.1} parent=0 // pred_region
    _
  $region21: #{spe_discriminator_forward.1} parent=0 // pred_fallthru
    _
  // Predicated region
  $region22: #{spe_discriminator_forward.1} parent=0 // pred_check
    _
  $region23: #{spe_discriminator_forward.1} parent=0 // pred_check_branch
    %29 = sbr.rel (0) target = $region25
  $region24: #{spe_discriminator_forward.1} parent=0 // pred_region
    _
  $region25: #{spe_discriminator_forward.1} parent=0 // pred_fallthru
    _
  // Predicated region
  $region26: #{spe_discriminator_forward.1} parent=0 // pred_check
    _
  $region27: #{spe_discriminator_forward.1} parent=0 // pred_check_branch
    %31 = sbr.rel (0) target = $region29
  $region28: #{spe_discriminator_forward.1} parent=0 // pred_region
    _
  $region29: #{spe_discriminator_forward.1} parent=0 // pred_fallthru
    _
  // Predicated region
  $region30: #{spe_discriminator_forward.1} parent=0 // pred_check
    _
  $region31: #{spe_discriminator_forward.1} parent=0 // pred_check_branch
    %33 = sbr.rel (0) target = $region33
  $region32: #{spe_discriminator_forward.1} parent=0 // pred_region
    _
  $region33: #{spe_discriminator_forward.1} parent=0 // pred_fallthru
    _
  // Predicated region
  $region34: #{spe_discriminator_forward.1} parent=0 // pred_check
    _
  $region35: #{spe_discriminator_forward.1} parent=0 // pred_check_branch
    %35 = sbr.rel (0) target = $region37
  $region36: #{spe_discriminator_forward.1} parent=0 // pred_region
    _
  $region37: #{spe_discriminator_forward.1} parent=0 // pred_fallthru
    _
  // Predicated region
  $region38: #{spe_discriminator_forward.1} parent=0 // pred_check
    _
  $region39: #{spe_discriminator_forward.1} parent=0 // pred_check_branch
    %37 = sbr.rel (0) target = $region41
  $region40: #{spe_discriminator_forward.1} parent=0 // pred_region
    _
  $region41: #{spe_discriminator_forward.1} parent=0 // pred_fallthru
    _
  // Predicated region
  $region42: #{spe_discriminator_forward.1} parent=0 // pred_check
    _
  $region43: #{spe_discriminator_forward.1} parent=0 // pred_check_branch
    %39 = sbr.rel (0) target = $region45
  $region44: #{spe_discriminator_forward.1} parent=0 // pred_region
    _
  $region45: #{spe_discriminator_forward.1} parent=0 // pred_fallthru
    _
  // Predicated region
  $region46: #{spe_discriminator_forward.1} parent=0 // pred_check
    _
  $region47: #{spe_discriminator_forward.1} parent=0 // pred_check_branch
    %41 = sbr.rel (0) target = $region49
  $region48: #{spe_discriminator_forward.1} parent=0 // pred_region
    _
  $region49: #{spe_discriminator_forward.1} parent=0 // pred_fallthru
    _
  // Predicated region
  $region50: #{spe_discriminator_forward.1} parent=0 // pred_check
    _
  $region51: #{spe_discriminator_forward.1} parent=0 // pred_check_branch
    %43 = sbr.rel (0) target = $region53
  $region52: #{spe_discriminator_forward.1} parent=0 // pred_region
    _
  $region53: #{spe_discriminator_forward.1} parent=0 // pred_fallthru
    _
  %v45 = vld [vmem:[%s0] sm:$0xf]
  %v46 = vld [vmem:[%s0 + $0x4] sm:$0xf]
  %v47 = vld [vmem:[%s1] sm:$0xf]
  %v48 = vld [vmem:[%s1 + $0x4] sm:$0x3]
  %v49 = vld [vmem:[%s7] sm:$0x1]
  %v51 = vlaneseq
  %v52 = vshrl.u32 %v51, 7
  %v53 = vsub.s32 0, %v52
  %v54 = vrot.slane %v49, %v53
  %v58 = vunpack.c.l.b16 %v45
  %v59 = vunpack.c.l.b16 %v46
  %v60 = vpack.c.b16 %v59, %v58
  %v63 = vunpack.c.l.b16 %v47
  %v64 = vunpack.c.l.b16 %v48
  %v65 = vpack.c.b16 %v64, %v63
  %vm66 = vcmask 97280
  %v68 = vsel %vm66, %v60, 0
  %vm70 = vcmask 1045504
  %v72 = vsel %vm70, %v65, 0
  %74 = vmatprep.subr.bf16.mxu0 0
  %75 = vmatpush1.bf16.msra.mxu0 %v72
  %76 = vmatprep.subr.bf16.mxu0 0
  %77 = vmatpush1.bf16.msra.mxu0 0
  %78 = vmatprep.subr.bf16.mxu0 0
  %79 = vmatpush1.bf16.msra.mxu0 0
  %80 = vmatprep.subr.bf16.mxu0 0
  %81 = vmatpush1.bf16.msra.mxu0 0
  %82 = vmatprep.subr.bf16.mxu0 0
  %83 = vmatpush1.bf16.msra.mxu0 0
  %84 = vmatprep.subr.bf16.mxu0 0
  %85 = vmatpush1.bf16.msra.mxu0 0
  %86 = vmatprep.subr.bf16.mxu0 0
  %87 = vmatpush1.bf16.msra.mxu0 0
  %88 = vmatprep.subr.bf16.mxu0 0
  %89 = vmatpush1.bf16.msra.mxu0 0
  %90 = vmatprep.subr.bf16.mxu0 0
  %91 = vmatpush1.bf16.msra.mxu0 0
  %92 = vmatprep.subr.bf16.mxu0 0
  %93 = vmatpush1.bf16.msra.mxu0 0
  %94 = vmatprep.subr.bf16.mxu0 0
  %95 = vmatpush1.bf16.msra.mxu0 0
  %96 = vmatprep.subr.bf16.mxu0 0
  %97 = vmatpush1.bf16.msra.mxu0 0
  %98 = vmatprep.subr.bf16.mxu0 0
  %99 = vmatpush1.bf16.msra.mxu0 0
  %100 = vmatprep.subr.bf16.mxu0 0
  %101 = vmatpush1.bf16.msra.mxu0 0
  %102 = vmatprep.subr.bf16.mxu0 0
  %103 = vmatpush1.bf16.msra.mxu0 0
  %104 = vmatprep.subr.bf16.mxu0 0
  %105 = vmatpush1.bf16.msra.mxu0 0
  %106 = vmatprep.mubr.bf16.mxu0 0
  %107 = vmatmul.mubr.bf16.gmra.mrb[0].mxu0 %v68
  %v108 = vpop.f32.mrb[0].mxu0
  %v109 = vadd.f32 %v54, %v108
  %v110 = vpop.f32.mrb[0].mxu0
  %v111 = vpop.f32.mrb[0].mxu0
  %v112 = vadd.f32 %v54, %v111
  %v113 = vpop.f32.mrb[0].mxu0
  %114 = vdwg.mxu0
  %vm115 = vcmp.gt.f32.partialorder %v109, 0.0
  %vm116 = vcmp.gt.f32.partialorder %v112, 0.0
  %v117 = vmul.f32 %v109, 0.01
  %v118 = vmul.f32 %v112, 0.01
  %v119 = vsel %vm115, %v109, %v117
  %v120 = vsel %vm116, %v112, %v118
  %v121 = vpack.c.bf16 %v120, %v119
  %v122 = vld [vmem:[%s2] sm:$0xf]
  %v123 = vld [vmem:[%s2 + $0x4] sm:$0xf]
  %v124 = vld [vmem:[%s2 + $0x8] sm:$0xf]
  %v125 = vld [vmem:[%s2 + $0xc] sm:$0xf]
  %v126 = vld [vmem:[%s8] sm:$0x1]
  %v128 = vlaneseq
  %v129 = vshrl.u32 %v128, 7
  %v130 = vsub.s32 0, %v129
  %v131 = vrot.slane %v126, %v130
  %v137 = vunpack.c.l.b16 %v122
  %v138 = vunpack.c.l.b16 %v123
  %v139 = vunpack.c.l.b16 %v124
  %v140 = vunpack.c.l.b16 %v125
  %v141 = vpack.c.b16 %v138, %v137
  %v142 = vpack.c.b16 %v140, %v139
  %vm145 = vcmask 261120
  %v147 = vsel %vm145, %v121, 0
  %149 = vmatprep.subr.bf16.mxu0 0
  %150 = vmatpush1.bf16.msra.mxu0 %v141
  %151 = vmatprep.subr.bf16.mxu0 0
  %152 = vmatpush1.bf16.msra.mxu0 %v142
  %153 = vmatprep.subr.bf16.mxu0 0
  %154 = vmatpush1.bf16.msra.mxu0 0
  %155 = vmatprep.subr.bf16.mxu0 0
  %156 = vmatpush1.bf16.msra.mxu0 0
  %157 = vmatprep.subr.bf16.mxu0 0
  %158 = vmatpush1.bf16.msra.mxu0 0
  %159 = vmatprep.subr.bf16.mxu0 0
  %160 = vmatpush1.bf16.msra.mxu0 0
  %161 = vmatprep.subr.bf16.mxu0 0
  %162 = vmatpush1.bf16.msra.mxu0 0
  %163 = vmatprep.subr.bf16.mxu0 0
  %164 = vmatpush1.bf16.msra.mxu0 0
  %165 = vmatprep.subr.bf16.mxu0 0
  %166 = vmatpush1.bf16.msra.mxu0 0
  %167 = vmatprep.subr.bf16.mxu0 0
  %168 = vmatpush1.bf16.msra.mxu0 0
  %169 = vmatprep.subr.bf16.mxu0 0
  %170 = vmatpush1.bf16.msra.mxu0 0
  %171 = vmatprep.subr.bf16.mxu0 0
  %172 = vmatpush1.bf16.msra.mxu0 0
  %173 = vmatprep.subr.bf16.mxu0 0
  %174 = vmatpush1.bf16.msra.mxu0 0
  %175 = vmatprep.subr.bf16.mxu0 0
  %176 = vmatpush1.bf16.msra.mxu0 0
  %177 = vmatprep.subr.bf16.mxu0 0
  %178 = vmatpush1.bf16.msra.mxu0 0
  %179 = vmatprep.subr.bf16.mxu0 0
  %180 = vmatpush1.bf16.msra.mxu0 0
  %181 = vmatprep.mubr.bf16.mxu0 0
  %182 = vmatmul.mubr.bf16.gmra.mrb[0].mxu0 %v147
  %v183 = vpop.f32.mrb[0].mxu0
  %v184 = vadd.f32 %v131, %v183
  %v185 = vpop.f32.mrb[0].mxu0
  %v186 = vpop.f32.mrb[0].mxu0
  %v187 = vadd.f32 %v131, %v186
  %v188 = vpop.f32.mrb[0].mxu0
  %189 = vdwg.mxu0
  %vm190 = vcmp.gt.f32.partialorder %v184, 0.0
  %vm191 = vcmp.gt.f32.partialorder %v187, 0.0
  %v192 = vmul.f32 %v184, 0.01
  %v193 = vmul.f32 %v187, 0.01
  %v194 = vsel %vm190, %v184, %v192
  %v195 = vsel %vm191, %v187, %v193
  %v196 = vpack.c.bf16 %v195, %v194
  %v197 = vld [vmem:[%s3] sm:$0xf]
  %v198 = vld [vmem:[%s3 + $0x4] sm:$0xf]
  %v199 = vld [vmem:[%s3 + $0x8] sm:$0xf]
  %v200 = vld [vmem:[%s3 + $0xc] sm:$0xf]
  %v201 = vld [vmem:[%s3 + $0x10] sm:$0xf]
  %v202 = vld [vmem:[%s3 + $0x14] sm:$0xf]
  %v203 = vld [vmem:[%s3 + $0x18] sm:$0xf]
  %v204 = vld [vmem:[%s3 + $0x1c] sm:$0xf]
  %v205 = vld [vmem:[%s9] sm:$0x1]
  %v207 = vlaneseq
  %v208 = vshrl.u32 %v207, 7
  %v209 = vsub.s32 0, %v208
  %v210 = vrot.slane %v205, %v209
  %v220 = vunpack.c.l.b16 %v197
  %v221 = vunpack.c.l.b16 %v198
  %v222 = vunpack.c.l.b16 %v199
  %v223 = vunpack.c.l.b16 %v200
  %v224 = vunpack.c.l.b16 %v201
  %v225 = vunpack.c.l.b16 %v202
  %v226 = vunpack.c.l.b16 %v203
  %v227 = vunpack.c.l.b16 %v204
  %v228 = vpack.c.b16 %v221, %v220
  %v229 = vpack.c.b16 %v223, %v222
  %v230 = vpack.c.b16 %v225, %v224
  %v231 = vpack.c.b16 %v227, %v226
  %vm236 = vcmask 523264
  %v238 = vsel %vm236, %v196, 0
  %240 = vmatprep.subr.bf16.mxu0 0
  %241 = vmatpush1.bf16.msra.mxu0 %v228
  %242 = vmatprep.subr.bf16.mxu0 0
  %243 = vmatpush1.bf16.msra.mxu0 %v229
  %244 = vmatprep.subr.bf16.mxu0 0
  %245 = vmatpush1.bf16.msra.mxu0 %v230
  %246 = vmatprep.subr.bf16.mxu0 0
  %247 = vmatpush1.bf16.msra.mxu0 %v231
  %248 = vmatprep.subr.bf16.mxu0 0
  %249 = vmatpush1.bf16.msra.mxu0 0
  %250 = vmatprep.subr.bf16.mxu0 0
  %251 = vmatpush1.bf16.msra.mxu0 0
  %252 = vmatprep.subr.bf16.mxu0 0
  %253 = vmatpush1.bf16.msra.mxu0 0
  %254 = vmatprep.subr.bf16.mxu0 0
  %255 = vmatpush1.bf16.msra.mxu0 0
  %256 = vmatprep.subr.bf16.mxu0 0
  %257 = vmatpush1.bf16.msra.mxu0 0
  %258 = vmatprep.subr.bf16.mxu0 0
  %259 = vmatpush1.bf16.msra.mxu0 0
  %260 = vmatprep.subr.bf16.mxu0 0
  %261 = vmatpush1.bf16.msra.mxu0 0
  %262 = vmatprep.subr.bf16.mxu0 0
  %263 = vmatpush1.bf16.msra.mxu0 0
  %264 = vmatprep.subr.bf16.mxu0 0
  %265 = vmatpush1.bf16.msra.mxu0 0
  %266 = vmatprep.subr.bf16.mxu0 0
  %267 = vmatpush1.bf16.msra.mxu0 0
  %268 = vmatprep.subr.bf16.mxu0 0
  %269 = vmatpush1.bf16.msra.mxu0 0
  %270 = vmatprep.subr.bf16.mxu0 0
  %271 = vmatpush1.bf16.msra.mxu0 0
  %272 = vmatprep.mubr.bf16.mxu0 0
  %273 = vmatmul.mubr.bf16.gmra.mrb[0].mxu0 %v238
  %v274 = vpop.f32.mrb[0].mxu0
  %v275 = vadd.f32 %v210, %v274
  %v276 = vpop.f32.mrb[0].mxu0
  %v277 = vpop.f32.mrb[0].mxu0
  %v278 = vadd.f32 %v210, %v277
  %v279 = vpop.f32.mrb[0].mxu0
  %280 = vdwg.mxu0
  %vm281 = vcmp.gt.f32.partialorder %v275, 0.0
  %vm282 = vcmp.gt.f32.partialorder %v278, 0.0
  %v283 = vmul.f32 %v275, 0.01
  %v284 = vmul.f32 %v278, 0.01
  %v285 = vsel %vm281, %v275, %v283
  %v286 = vsel %vm282, %v278, %v284
  %v287 = vpack.c.bf16 %v286, %v285
  %v288 = vld [vmem:[%s4] sm:$0xff]
  %v289 = vld [vmem:[%s4 + $0x8] sm:$0xff]
  %v290 = vld [vmem:[%s4 + $0x10] sm:$0xff]
  %v291 = vld [vmem:[%s4 + $0x18] sm:$0xff]
  %v292 = vld [vmem:[%s4 + $0x20] sm:$0xff]
  %v293 = vld [vmem:[%s4 + $0x28] sm:$0xff]
  %v294 = vld [vmem:[%s4 + $0x30] sm:$0xff]
  %v295 = vld [vmem:[%s4 + $0x38] sm:$0xff]
  %v296 = vld [vmem:[%s4 + $0x40] sm:$0xff]
  %v297 = vld [vmem:[%s4 + $0x48] sm:$0xff]
  %v298 = vld [vmem:[%s4 + $0x50] sm:$0xff]
  %v299 = vld [vmem:[%s4 + $0x58] sm:$0xff]
  %v300 = vld [vmem:[%s4 + $0x60] sm:$0xff]
  %v301 = vld [vmem:[%s4 + $0x68] sm:$0xff]
  %v302 = vld [vmem:[%s4 + $0x70] sm:$0xff]
  %v303 = vld [vmem:[%s4 + $0x78] sm:$0xff]
  %v304 = vld [vmem:[%s10] sm:$0x3]
  %v306 = vlaneseq
  %v307 = vshrl.u32 %v306, 7
  %v308 = vsub.s32 0, %v307
  %v309 = vrot.slane %v304, %v308
  %v310 = vlaneseq
  %v311 = vshrl.u32 %v310, 7
  %v312 = vsub.s32 1, %v311
  %v313 = vrot.slane %v304, %v312
  %v332 = vunpack.c.l.b16 %v288
  %v333 = vunpack.c.h.b16 %v288
  %v334 = vunpack.c.l.b16 %v289
  %v335 = vunpack.c.h.b16 %v289
  %v336 = vunpack.c.l.b16 %v290
  %v337 = vunpack.c.h.b16 %v290
  %v338 = vunpack.c.l.b16 %v291
  %v339 = vunpack.c.h.b16 %v291
  %v340 = vunpack.c.l.b16 %v292
  %v341 = vunpack.c.h.b16 %v292
  %v342 = vunpack.c.l.b16 %v293
  %v343 = vunpack.c.h.b16 %v293
  %v344 = vunpack.c.l.b16 %v294
  %v345 = vunpack.c.h.b16 %v294
  %v346 = vunpack.c.l.b16 %v295
  %v347 = vunpack.c.h.b16 %v295
  %v348 = vunpack.c.l.b16 %v296
  %v349 = vunpack.c.h.b16 %v296
  %v350 = vunpack.c.l.b16 %v297
  %v351 = vunpack.c.h.b16 %v297
  %v352 = vunpack.c.l.b16 %v298
  %v353 = vunpack.c.h.b16 %v298
  %v354 = vunpack.c.l.b16 %v299
  %v355 = vunpack.c.h.b16 %v299
  %v356 = vunpack.c.l.b16 %v300
  %v357 = vunpack.c.h.b16 %v300
  %v358 = vunpack.c.l.b16 %v301
  %v359 = vunpack.c.h.b16 %v301
  %v360 = vunpack.c.l.b16 %v302
  %v361 = vunpack.c.h.b16 %v302
  %v362 = vunpack.c.l.b16 %v303
  %v363 = vunpack.c.h.b16 %v303
  %v364 = vpack.c.b16 %v334, %v332
  %v365 = vpack.c.b16 %v335, %v333
  %v366 = vpack.c.b16 %v338, %v336
  %v367 = vpack.c.b16 %v339, %v337
  %v368 = vpack.c.b16 %v342, %v340
  %v369 = vpack.c.b16 %v343, %v341
  %v370 = vpack.c.b16 %v346, %v344
  %v371 = vpack.c.b16 %v347, %v345
  %v372 = vpack.c.b16 %v350, %v348
  %v373 = vpack.c.b16 %v351, %v349
  %v374 = vpack.c.b16 %v354, %v352
  %v375 = vpack.c.b16 %v355, %v353
  %v376 = vpack.c.b16 %v358, %v356
  %v377 = vpack.c.b16 %v359, %v357
  %v378 = vpack.c.b16 %v362, %v360
  %v379 = vpack.c.b16 %v363, %v361
  %396 = vmatprep.subr.bf16.mxu0 %v365
  %397 = vmatpush1.bf16.msra.mxu0 %v364
  %398 = vmatprep.subr.bf16.mxu0 %v367
  %399 = vmatpush1.bf16.msra.mxu0 %v366
  %400 = vmatprep.subr.bf16.mxu0 %v369
  %401 = vmatpush1.bf16.msra.mxu0 %v368
  %402 = vmatprep.subr.bf16.mxu0 %v371
  %403 = vmatpush1.bf16.msra.mxu0 %v370
  %404 = vmatprep.subr.bf16.mxu0 %v373
  %405 = vmatpush1.bf16.msra.mxu0 %v372
  %406 = vmatprep.subr.bf16.mxu0 %v375
  %407 = vmatpush1.bf16.msra.mxu0 %v374
  %408 = vmatprep.subr.bf16.mxu0 %v377
  %409 = vmatpush1.bf16.msra.mxu0 %v376
  %410 = vmatprep.subr.bf16.mxu0 %v379
  %411 = vmatpush1.bf16.msra.mxu0 %v378
  %412 = vmatprep.subr.bf16.mxu0 0
  %413 = vmatpush1.bf16.msra.mxu0 0
  %414 = vmatprep.subr.bf16.mxu0 0
  %415 = vmatpush1.bf16.msra.mxu0 0
  %416 = vmatprep.subr.bf16.mxu0 0
  %417 = vmatpush1.bf16.msra.mxu0 0
  %418 = vmatprep.subr.bf16.mxu0 0
  %419 = vmatpush1.bf16.msra.mxu0 0
  %420 = vmatprep.subr.bf16.mxu0 0
  %421 = vmatpush1.bf16.msra.mxu0 0
  %422 = vmatprep.subr.bf16.mxu0 0
  %423 = vmatpush1.bf16.msra.mxu0 0
  %424 = vmatprep.subr.bf16.mxu0 0
  %425 = vmatpush1.bf16.msra.mxu0 0
  %426 = vmatprep.subr.bf16.mxu0 0
  %427 = vmatpush1.bf16.msra.mxu0 0
  %428 = vmatprep.mubr.bf16.mxu0 0
  %429 = vmatmul.mubr.bf16.gmra.mrb[0].mxu0 %v287
  %v430 = vpop.f32.mrb[0].mxu0
  %v431 = vadd.f32 %v309, %v430
  %v432 = vpop.f32.mrb[0].mxu0
  %v433 = vadd.f32 %v313, %v432
  %v434 = vpop.f32.mrb[0].mxu0
  %v435 = vadd.f32 %v309, %v434
  %v436 = vpop.f32.mrb[0].mxu0
  %v437 = vadd.f32 %v313, %v436
  %438 = vdwg.mxu0
  %vm439 = vcmp.gt.f32.partialorder %v431, 0.0
  %vm440 = vcmp.gt.f32.partialorder %v433, 0.0
  %vm441 = vcmp.gt.f32.partialorder %v435, 0.0
  %vm442 = vcmp.gt.f32.partialorder %v437, 0.0
  %v443 = vmul.f32 %v431, 0.01
  %v444 = vmul.f32 %v433, 0.01
  %v445 = vmul.f32 %v435, 0.01
  %v446 = vmul.f32 %v437, 0.01
  %v447 = vsel %vm439, %v431, %v443
  %v448 = vsel %vm440, %v433, %v444
  %v449 = vsel %vm441, %v435, %v445
  %v450 = vsel %vm442, %v437, %v446
  %v451 = vpack.c.bf16 %v449, %v447
  %v452 = vpack.c.bf16 %v450, %v448
  %v453 = vld [vmem:[%s5] sm:$0xf]
  %v454 = vld [vmem:[%s5 + $0x4] sm:$0xf]
  %v455 = vld [vmem:[%s5 + $0x8] sm:$0xf]
  %v456 = vld [vmem:[%s5 + $0xc] sm:$0xf]
  %v457 = vld [vmem:[%s5 + $0x10] sm:$0xf]
  %v458 = vld [vmem:[%s5 + $0x14] sm:$0xf]
  %v459 = vld [vmem:[%s5 + $0x18] sm:$0xf]
  %v460 = vld [vmem:[%s5 + $0x1c] sm:$0xf]
  %v461 = vld [vmem:[%s5 + $0x20] sm:$0xf]
  %v462 = vld [vmem:[%s5 + $0x24] sm:$0xf]
  %v463 = vld [vmem:[%s5 + $0x28] sm:$0xf]
  %v464 = vld [vmem:[%s5 + $0x2c] sm:$0xf]
  %v465 = vld [vmem:[%s5 + $0x30] sm:$0xf]
  %v466 = vld [vmem:[%s5 + $0x34] sm:$0xf]
  %v467 = vld [vmem:[%s5 + $0x38] sm:$0xf]
  %v468 = vld [vmem:[%s5 + $0x3c] sm:$0xf]
  %v469 = vld [vmem:[%s5 + $0x40] sm:$0xf]
  %v470 = vld [vmem:[%s5 + $0x44] sm:$0xf]
  %v471 = vld [vmem:[%s5 + $0x48] sm:$0xf]
  %v472 = vld [vmem:[%s5 + $0x4c] sm:$0xf]
  %v473 = vld [vmem:[%s5 + $0x50] sm:$0xf]
  %v474 = vld [vmem:[%s5 + $0x54] sm:$0xf]
  %v475 = vld [vmem:[%s5 + $0x58] sm:$0xf]
  %v476 = vld [vmem:[%s5 + $0x5c] sm:$0xf]
  %v477 = vld [vmem:[%s5 + $0x60] sm:$0xf]
  %v478 = vld [vmem:[%s5 + $0x64] sm:$0xf]
  %v479 = vld [vmem:[%s5 + $0x68] sm:$0xf]
  %v480 = vld [vmem:[%s5 + $0x6c] sm:$0xf]
  %v481 = vld [vmem:[%s5 + $0x70] sm:$0xf]
  %v482 = vld [vmem:[%s5 + $0x74] sm:$0xf]
  %v483 = vld [vmem:[%s5 + $0x78] sm:$0xf]
  %v484 = vld [vmem:[%s5 + $0x7c] sm:$0xf]
  %v485 = vld [vmem:[%s11] sm:$0x1]
  %v487 = vlaneseq
  %v488 = vshrl.u32 %v487, 7
  %v489 = vsub.s32 0, %v488
  %v490 = vrot.slane %v485, %v489
  %v524 = vunpack.c.l.b16 %v453
  %v525 = vunpack.c.l.b16 %v454
  %v526 = vunpack.c.l.b16 %v455
  %v527 = vunpack.c.l.b16 %v456
  %v528 = vunpack.c.l.b16 %v457
  %v529 = vunpack.c.l.b16 %v458
  %v530 = vunpack.c.l.b16 %v459
  %v531 = vunpack.c.l.b16 %v460
  %v532 = vunpack.c.l.b16 %v461
  %v533 = vunpack.c.l.b16 %v462
  %v534 = vunpack.c.l.b16 %v463
  %v535 = vunpack.c.l.b16 %v464
  %v536 = vunpack.c.l.b16 %v465
  %v537 = vunpack.c.l.b16 %v466
  %v538 = vunpack.c.l.b16 %v467
  %v539 = vunpack.c.l.b16 %v468
  %v540 = vunpack.c.l.b16 %v469
  %v541 = vunpack.c.l.b16 %v470
  %v542 = vunpack.c.l.b16 %v471
  %v543 = vunpack.c.l.b16 %v472
  %v544 = vunpack.c.l.b16 %v473
  %v545 = vunpack.c.l.b16 %v474
  %v546 = vunpack.c.l.b16 %v475
  %v547 = vunpack.c.l.b16 %v476
  %v548 = vunpack.c.l.b16 %v477
  %v549 = vunpack.c.l.b16 %v478
  %v550 = vunpack.c.l.b16 %v479
  %v551 = vunpack.c.l.b16 %v480
  %v552 = vunpack.c.l.b16 %v481
  %v553 = vunpack.c.l.b16 %v482
  %v554 = vunpack.c.l.b16 %v483
  %v555 = vunpack.c.l.b16 %v484
  %v556 = vpack.c.b16 %v525, %v524
  %v557 = vpack.c.b16 %v527, %v526
  %v558 = vpack.c.b16 %v529, %v528
  %v559 = vpack.c.b16 %v531, %v530
  %v560 = vpack.c.b16 %v533, %v532
  %v561 = vpack.c.b16 %v535, %v534
  %v562 = vpack.c.b16 %v537, %v536
  %v563 = vpack.c.b16 %v539, %v538
  %v564 = vpack.c.b16 %v541, %v540
  %v565 = vpack.c.b16 %v543, %v542
  %v566 = vpack.c.b16 %v545, %v544
  %v567 = vpack.c.b16 %v547, %v546
  %v568 = vpack.c.b16 %v549, %v548
  %v569 = vpack.c.b16 %v551, %v550
  %v570 = vpack.c.b16 %v553, %v552
  %v571 = vpack.c.b16 %v555, %v554
  %588 = vmatprep.subr.bf16.mxu0 0
  %589 = vmatpush1.bf16.msra.mxu0 %v556
  %590 = vmatprep.subr.bf16.mxu0 0
  %591 = vmatpush1.bf16.msra.mxu0 %v557
  %592 = vmatprep.subr.bf16.mxu0 0
  %593 = vmatpush1.bf16.msra.mxu0 %v558
  %594 = vmatprep.subr.bf16.mxu0 0
  %595 = vmatpush1.bf16.msra.mxu0 %v559
  %596 = vmatprep.subr.bf16.mxu0 0
  %597 = vmatpush1.bf16.msra.mxu0 %v560
  %598 = vmatprep.subr.bf16.mxu0 0
  %599 = vmatpush1.bf16.msra.mxu0 %v561
  %600 = vmatprep.subr.bf16.mxu0 0
  %601 = vmatpush1.bf16.msra.mxu0 %v562
  %602 = vmatprep.subr.bf16.mxu0 0
  %603 = vmatpush1.bf16.msra.mxu0 %v563
  %604 = vmatprep.subr.bf16.mxu0 0
  %605 = vmatpush1.bf16.msra.mxu0 %v564
  %606 = vmatprep.subr.bf16.mxu0 0
  %607 = vmatpush1.bf16.msra.mxu0 %v565
  %608 = vmatprep.subr.bf16.mxu0 0
  %609 = vmatpush1.bf16.msra.mxu0 %v566
  %610 = vmatprep.subr.bf16.mxu0 0
  %611 = vmatpush1.bf16.msra.mxu0 %v567
  %612 = vmatprep.subr.bf16.mxu0 0
  %613 = vmatpush1.bf16.msra.mxu0 %v568
  %614 = vmatprep.subr.bf16.mxu0 0
  %615 = vmatpush1.bf16.msra.mxu0 %v569
  %616 = vmatprep.subr.bf16.mxu0 0
  %617 = vmatpush1.bf16.msra.mxu0 %v570
  %618 = vmatprep.subr.bf16.mxu0 0
  %619 = vmatpush1.bf16.msra.mxu0 %v571
  %620 = vmatprep.mubr.bf16.mxu0 %v452
  %621 = vmatmul.mubr.bf16.gmra.mrb[0].mxu0 %v451
  %v622 = vpop.f32.mrb[0].mxu0
  %v623 = vadd.f32 %v490, %v622
  %v624 = vpop.f32.mrb[0].mxu0
  %v625 = vpop.f32.mrb[0].mxu0
  %v626 = vadd.f32 %v490, %v625
  %v627 = vpop.f32.mrb[0].mxu0
  %628 = vdwg.mxu0
  %vm629 = vcmp.gt.f32.partialorder %v623, 0.0
  %vm630 = vcmp.gt.f32.partialorder %v626, 0.0
  %v631 = vmul.f32 %v623, 0.01
  %v632 = vmul.f32 %v626, 0.01
  %v633 = vsel %vm629, %v623, %v631
  %v634 = vsel %vm630, %v626, %v632
  %v635 = vpack.c.bf16 %v634, %v633
  %v636 = vld [vmem:[%s6] sm:$0xf]
  %v637 = vld [vmem:[%s6 + $0x4] sm:$0xf]
  %v638 = vld [vmem:[%s6 + $0x8] sm:$0xf]
  %v639 = vld [vmem:[%s6 + $0xc] sm:$0xf]
  %v640 = vld [vmem:[%s6 + $0x10] sm:$0xf]
  %v641 = vld [vmem:[%s6 + $0x14] sm:$0xf]
  %v642 = vld [vmem:[%s6 + $0x18] sm:$0xf]
  %v643 = vld [vmem:[%s6 + $0x1c] sm:$0xf]
  %v644 = vld [vmem:[%s6 + $0x20] sm:$0xf]
  %v645 = vld [vmem:[%s6 + $0x24] sm:$0xf]
  %v646 = vld [vmem:[%s6 + $0x28] sm:$0xf]
  %v647 = vld [vmem:[%s6 + $0x2c] sm:$0xf]
  %v648 = vld [vmem:[%s6 + $0x30] sm:$0xf]
  %v649 = vld [vmem:[%s6 + $0x34] sm:$0xf]
  %v650 = vld [vmem:[%s6 + $0x38] sm:$0xf]
  %v651 = vld [vmem:[%s6 + $0x3c] sm:$0xf]
  %v652 = vld [vmem:[%s12] sm:$0x1]
  %v654 = vlaneseq
  %v655 = vshrl.u32 %v654, 7
  %v656 = vsub.s32 0, %v655
  %v657 = vrot.slane %v652, %v656
  %v675 = vunpack.c.l.b16 %v636
  %v676 = vunpack.c.l.b16 %v637
  %v677 = vunpack.c.l.b16 %v638
  %v678 = vunpack.c.l.b16 %v639
  %v679 = vunpack.c.l.b16 %v640
  %v680 = vunpack.c.l.b16 %v641
  %v681 = vunpack.c.l.b16 %v642
  %v682 = vunpack.c.l.b16 %v643
  %v683 = vunpack.c.l.b16 %v644
  %v684 = vunpack.c.l.b16 %v645
  %v685 = vunpack.c.l.b16 %v646
  %v686 = vunpack.c.l.b16 %v647
  %v687 = vunpack.c.l.b16 %v648
  %v688 = vunpack.c.l.b16 %v649
  %v689 = vunpack.c.l.b16 %v650
  %v690 = vunpack.c.l.b16 %v651
  %v691 = vpack.c.b16 %v676, %v675
  %v692 = vpack.c.b16 %v678, %v677
  %v693 = vpack.c.b16 %v680, %v679
  %v694 = vpack.c.b16 %v682, %v681
  %v695 = vpack.c.b16 %v684, %v683
  %v696 = vpack.c.b16 %v686, %v685
  %v697 = vpack.c.b16 %v688, %v687
  %v698 = vpack.c.b16 %v690, %v689
  %707 = vmatprep.subr.bf16.mxu0 0
  %708 = vmatpush1.bf16.msra.mxu0 %v691
  %709 = vmatprep.subr.bf16.mxu0 0
  %710 = vmatpush1.bf16.msra.mxu0 %v692
  %711 = vmatprep.subr.bf16.mxu0 0
  %712 = vmatpush1.bf16.msra.mxu0 %v693
  %713 = vmatprep.subr.bf16.mxu0 0
  %714 = vmatpush1.bf16.msra.mxu0 %v694
  %715 = vmatprep.subr.bf16.mxu0 0
  %716 = vmatpush1.bf16.msra.mxu0 %v695
  %717 = vmatprep.subr.bf16.mxu0 0
  %718 = vmatpush1.bf16.msra.mxu0 %v696
  %719 = vmatprep.subr.bf16.mxu0 0
  %720 = vmatpush1.bf16.msra.mxu0 %v697
  %721 = vmatprep.subr.bf16.mxu0 0
  %722 = vmatpush1.bf16.msra.mxu0 %v698
  %723 = vmatprep.subr.bf16.mxu0 0
  %724 = vmatpush1.bf16.msra.mxu0 0
  %725 = vmatprep.subr.bf16.mxu0 0
  %726 = vmatpush1.bf16.msra.mxu0 0
  %727 = vmatprep.subr.bf16.mxu0 0
  %728 = vmatpush1.bf16.msra.mxu0 0
  %729 = vmatprep.subr.bf16.mxu0 0
  %730 = vmatpush1.bf16.msra.mxu0 0
  %731 = vmatprep.subr.bf16.mxu0 0
  %732 = vmatpush1.bf16.msra.mxu0 0
  %733 = vmatprep.subr.bf16.mxu0 0
  %734 = vmatpush1.bf16.msra.mxu0 0
  %735 = vmatprep.subr.bf16.mxu0 0
  %736 = vmatpush1.bf16.msra.mxu0 0
  %737 = vmatprep.subr.bf16.mxu0 0
  %738 = vmatpush1.bf16.msra.mxu0 0
  %739 = vmatprep.mubr.bf16.mxu0 0
  %740 = vmatmul.mubr.bf16.gmra.mrb[0].mxu0 %v635
  %v741 = vpop.f32.mrb[0].mxu0
  %v742 = vadd.f32 %v657, %v741
  %v743 = vpop.f32.mrb[0].mxu0
  %v744 = vpop.f32.mrb[0].mxu0
  %v745 = vadd.f32 %v657, %v744
  %v746 = vpop.f32.mrb[0].mxu0
  %747 = vdwg.mxu0
  %vm748 = vcmp.gt.f32.partialorder %v742, 0.0
  %vm749 = vcmp.gt.f32.partialorder %v745, 0.0
  %v750 = vmul.f32 %v742, 0.01
  %v751 = vmul.f32 %v745, 0.01
  %v752 = vsel %vm748, %v742, %v750
  %v753 = vsel %vm749, %v745, %v751
  %v754 = vxor.u32 %v752, 2147483648
  %v755 = vxor.u32 %v753, 2147483648
  %v756 = vmul.f32 %v754, 1.442695
  %v757 = vpow.pop %v756
  %v758 = vmul.f32 %v755, 1.442695
  %v759 = vpow.pop %v758
  %v760 = vadd.f32 %v757, 1.0
  %v761 = vadd.f32 %v759, 1.0
  %v762 = vrcp.pop %v760
  %v763 = vmul.f32 1.0, %v762
  %v764 = vrcp.pop %v761
  %v765 = vmul.f32 1.0, %v764
  %766 = vst [vmem:[%s13] sm:$0xff] %v763
  %767 = vst [vmem:[%s13 + $0x8] sm:$0xff] %v765
  // Predicated region
  $region54: #{spe_discriminator_forward.1} parent=0 // pred_check
    _
  $region55: #{spe_discriminator_forward.1} parent=0 // pred_check_branch
    %769 = sbr.rel (0) target = $region57
  $region56: #{spe_discriminator_forward.1} parent=0 // pred_region
    _
  $region57: #{spe_discriminator_forward.1} parent=0 // pred_fallthru
    _
  // Predicated region
  $region58: #{spe_discriminator_forward.1} parent=0 // pred_check
    _
  $region59: #{spe_discriminator_forward.1} parent=0 // pred_check_branch
    %771 = sbr.rel (0) target = $region61
  $region60: #{spe_discriminator_forward.1} parent=0 // pred_region
    _
  $region61: #{spe_discriminator_forward.1} parent=0 // pred_fallthru
    _

</llo_original>
